<compile_context>
chip_gen: v7x
topology: tpu7x:2x2x1
jax: 0.10.0
libtpu: 0.0.40
codegen_flags: <defaults>
</compile_context>

<pallas_src>
import functools

import jax
import jax.numpy as jnp
from jax.experimental import pallas as pl
from jax.experimental.pallas import tpu as pltpu  # noqa: F401  (TPU memory-space helpers if tiling grows)


def _msd_kernel(bits_ref, x_ref, w_ref, b_ref, o_ref, *, p, num_samples):
    """Single invocation: fold all dropout samples into one mask-count + one matmul."""
    # keep with probability 1-p:  keep = (u >= p), decided purely in the
    # integer domain on the low 23 random bits (no u32->f32 cast per sample).
    threshold = jnp.uint32(int(p * float(1 << 23)))

    keep_count = jnp.zeros(x_ref.shape, dtype=jnp.float32)   # (B, H)
    # num_samples is small & static: unrolled Python loop gives the scheduler
    # full visibility to interleave VPU mask math with the matmul prologue.
    for s in range(num_samples):
        u23 = bits_ref[s] & jnp.uint32(0x7FFFFF)
        keep_count = keep_count + (u23 >= threshold).astype(jnp.float32)

    # mean_s of inverted-dropout scaling folded into one multiply.
    combined_scale = jnp.float32(1.0 / ((1.0 - p) * num_samples))
    x_eff = x_ref[...].astype(jnp.float32) * keep_count * combined_scale

    # Single MXU matmul + bias (classifier applied once to the mask-averaged input).
    o_ref[...] = (
        jnp.dot(x_eff, w_ref[...].astype(jnp.float32),
                preferred_element_type=jnp.float32)
        + b_ref[...].astype(jnp.float32)
    ).astype(o_ref.dtype)


def multi_sample_dropout(x, w, b, key, *, max_dropout_rate, num_samples):
    """x: (B, H), w: (H, C), b: (C,) or (1, C) -> (B, C) float32."""
    B, H = x.shape
    H2, C = w.shape
    assert H2 == H

    # Lane-dense output: pad the class dim up to a multiple of 128 (zero weight
    # columns / zero bias), slice the real columns back out after the call.
    C_pad = ((C + 127) // 128) * 128
    w_pad = jnp.zeros((H, C_pad), dtype=w.dtype).at[:, :C].set(w)
    b_pad = jnp.zeros((1, C_pad), dtype=jnp.float32).at[:, :C].set(
        jnp.asarray(b, dtype=jnp.float32).reshape(1, C))

    # Uniform random bits for all samples, generated once outside the kernel.
    # TODO(synk): on real TPU hardware this could use pltpu.prng_random_bits in-kernel,
    # but that primitive has no CPU/interpret lowering, so bits are passed in instead.
    bits = jax.random.bits(key, (num_samples, B, H), dtype=jnp.uint32)

    kernel = functools.partial(_msd_kernel,
                               p=float(max_dropout_rate),
                               num_samples=int(num_samples))

    flops = 2 * B * H * C_pad
    bytes_accessed = 4 * (num_samples * B * H + B * H + H * C_pad + C_pad + B * C_pad)

    out_pad = pl.pallas_call(
        kernel,
        out_shape=jax.ShapeDtypeStruct((B, C_pad), jnp.float32),
        cost_estimate=pl.CostEstimate(flops=flops,
                                      transcendentals=0,
                                      bytes_accessed=bytes_accessed),
    )(bits, x, w_pad, b_pad)

    return out_pad[:, :C]


def _reference(x, w, b, bits, *, p, num_samples):
    """Pure-JAX reference with identical per-sample keep decisions."""
    threshold = jnp.uint32(int(p * float(1 << 23)))
    outs = []
    for s in range(num_samples):
        keep = ((bits[s] & jnp.uint32(0x7FFFFF)) >= threshold).astype(jnp.float32)
        x_drop = x * keep * (1.0 / (1.0 - p))
        outs.append(x_drop @ w + b.reshape(1, -1))
    return jnp.mean(jnp.stack(outs, axis=0), axis=0)


if __name__ == "__main__":
    # Small shapes consistent with the module's usage: (batch, hidden) -> (batch, classes)
    B, H, C = 8, 128, 8
    max_dropout_rate = 0.3
    num_samples = 4

    key = jax.random.PRNGKey(0)
    kx, kw, kb, kdrop = jax.random.split(key, 4)

    x = jax.random.normal(kx, (B, H), dtype=jnp.float32)
    # Deterministic Linear(H, C) init (like nn.Linear's uniform init)
    bound = 1.0 / (H ** 0.5)
    w = jax.random.uniform(kw, (H, C), dtype=jnp.float32, minval=-bound, maxval=bound)
    b = jax.random.uniform(kb, (C,), dtype=jnp.float32, minval=-bound, maxval=bound)

    out = multi_sample_dropout(x, w, b, kdrop,
                               max_dropout_rate=max_dropout_rate,
                               num_samples=num_samples)
    out = jax.block_until_ready(out)
    assert out.shape == (B, C) and out.dtype == jnp.float32

    # Correctness check against a pure-JAX reference using the same mask bits
    # (kernel differs only by f32 summation order via the single-matmul form).
    bits = jax.random.bits(kdrop, (num_samples, B, H), dtype=jnp.uint32)
    ref = _reference(x, w, b, bits, p=max_dropout_rate, num_samples=num_samples)
    assert jnp.allclose(out, ref, rtol=1e-4, atol=1e-4), "mismatch vs reference"

    print("KERNEL_OK")
</pallas_src>

<mosaic_0001>
module attributes {stable_mosaic.version = 11 : i64} {
  func.func @_msd_kernel(%arg0: memref<4x8x128xi32, #tpu.memory_space<vmem>>, %arg1: memref<8x128xf32, #tpu.memory_space<vmem>>, %arg2: memref<128x128xf32, #tpu.memory_space<vmem>>, %arg3: memref<1x128xf32, #tpu.memory_space<vmem>>, %arg4: memref<8x128xf32, #tpu.memory_space<vmem>>) attributes {dimension_semantics = [], scalar_prefetch = 0 : i64, scratch_operands = 0 : i64, tpu.core_type = #tpu.core_type<tc>} {
    %cst = arith.constant 0.000000e+00 : f32
    %0 = vector.broadcast %cst : f32 to vector<8x128xf32>
    %c0 = arith.constant 0 : index
    %c0_0 = arith.constant 0 : index
    %c0_1 = arith.constant 0 : index
    %1 = vector.load %arg0[%c0, %c0_0, %c0_1] : memref<4x8x128xi32, #tpu.memory_space<vmem>>, vector<1x8x128xi32>
    %2 = vector.shape_cast %1 : vector<1x8x128xi32> to vector<8x128xi32>
    %c8388607_i32 = arith.constant 8388607 : i32
    %3 = vector.broadcast %c8388607_i32 : i32 to vector<8x128xi32>
    %4 = arith.andi %2, %3 : vector<8x128xi32>
    %c2516582_i32 = arith.constant 2516582 : i32
    %5 = vector.broadcast %c2516582_i32 : i32 to vector<8x128xi32>
    %6 = arith.cmpi uge, %4, %5 : vector<8x128xi32>
    %7 = arith.extui %6 : vector<8x128xi1> to vector<8x128xi32>
    %8 = arith.sitofp %7 : vector<8x128xi32> to vector<8x128xf32>
    %9 = arith.addf %0, %8 : vector<8x128xf32>
    %c1 = arith.constant 1 : index
    %c0_2 = arith.constant 0 : index
    %c0_3 = arith.constant 0 : index
    %10 = vector.load %arg0[%c1, %c0_2, %c0_3] : memref<4x8x128xi32, #tpu.memory_space<vmem>>, vector<1x8x128xi32>
    %11 = vector.shape_cast %10 : vector<1x8x128xi32> to vector<8x128xi32>
    %c8388607_i32_4 = arith.constant 8388607 : i32
    %12 = vector.broadcast %c8388607_i32_4 : i32 to vector<8x128xi32>
    %13 = arith.andi %11, %12 : vector<8x128xi32>
    %c2516582_i32_5 = arith.constant 2516582 : i32
    %14 = vector.broadcast %c2516582_i32_5 : i32 to vector<8x128xi32>
    %15 = arith.cmpi uge, %13, %14 : vector<8x128xi32>
    %16 = arith.extui %15 : vector<8x128xi1> to vector<8x128xi32>
    %17 = arith.sitofp %16 : vector<8x128xi32> to vector<8x128xf32>
    %18 = arith.addf %9, %17 : vector<8x128xf32>
    %c2 = arith.constant 2 : index
    %c0_6 = arith.constant 0 : index
    %c0_7 = arith.constant 0 : index
    %19 = vector.load %arg0[%c2, %c0_6, %c0_7] : memref<4x8x128xi32, #tpu.memory_space<vmem>>, vector<1x8x128xi32>
    %20 = vector.shape_cast %19 : vector<1x8x128xi32> to vector<8x128xi32>
    %c8388607_i32_8 = arith.constant 8388607 : i32
    %21 = vector.broadcast %c8388607_i32_8 : i32 to vector<8x128xi32>
    %22 = arith.andi %20, %21 : vector<8x128xi32>
    %c2516582_i32_9 = arith.constant 2516582 : i32
    %23 = vector.broadcast %c2516582_i32_9 : i32 to vector<8x128xi32>
    %24 = arith.cmpi uge, %22, %23 : vector<8x128xi32>
    %25 = arith.extui %24 : vector<8x128xi1> to vector<8x128xi32>
    %26 = arith.sitofp %25 : vector<8x128xi32> to vector<8x128xf32>
    %27 = arith.addf %18, %26 : vector<8x128xf32>
    %c3 = arith.constant 3 : index
    %c0_10 = arith.constant 0 : index
    %c0_11 = arith.constant 0 : index
    %28 = vector.load %arg0[%c3, %c0_10, %c0_11] : memref<4x8x128xi32, #tpu.memory_space<vmem>>, vector<1x8x128xi32>
    %29 = vector.shape_cast %28 : vector<1x8x128xi32> to vector<8x128xi32>
    %c8388607_i32_12 = arith.constant 8388607 : i32
    %30 = vector.broadcast %c8388607_i32_12 : i32 to vector<8x128xi32>
    %31 = arith.andi %29, %30 : vector<8x128xi32>
    %c2516582_i32_13 = arith.constant 2516582 : i32
    %32 = vector.broadcast %c2516582_i32_13 : i32 to vector<8x128xi32>
    %33 = arith.cmpi uge, %31, %32 : vector<8x128xi32>
    %34 = arith.extui %33 : vector<8x128xi1> to vector<8x128xi32>
    %35 = arith.sitofp %34 : vector<8x128xi32> to vector<8x128xf32>
    %36 = arith.addf %27, %35 : vector<8x128xf32>
    %c0_14 = arith.constant 0 : index
    %c0_15 = arith.constant 0 : index
    %37 = vector.load %arg1[%c0_14, %c0_15] : memref<8x128xf32, #tpu.memory_space<vmem>>, vector<8x128xf32>
    %38 = arith.mulf %37, %36 : vector<8x128xf32>
    %cst_16 = arith.constant 0.357142866 : f32
    %39 = vector.broadcast %cst_16 : f32 to vector<8x128xf32>
    %40 = arith.mulf %38, %39 : vector<8x128xf32>
    %c0_17 = arith.constant 0 : index
    %c0_18 = arith.constant 0 : index
    %41 = vector.load %arg2[%c0_17, %c0_18] : memref<128x128xf32, #tpu.memory_space<vmem>>, vector<128x128xf32>
    %cst_19 = arith.constant dense<0.000000e+00> : vector<8x128xf32>
    %42 = tpu.matmul %40, %41, %cst_19 {dimension_numbers = #tpu.dot_dimension_numbers<[1], [0], [0], [1], [0, 0, 1, 1], [], []>} : vector<8x128xf32>, vector<128x128xf32>, vector<8x128xf32> -> vector<8x128xf32>
    %c0_20 = arith.constant 0 : index
    %c0_21 = arith.constant 0 : index
    %43 = vector.load %arg3[%c0_20, %c0_21] : memref<1x128xf32, #tpu.memory_space<vmem>>, vector<1x128xf32>
    %44 = vector.broadcast %43 : vector<1x128xf32> to vector<8x128xf32>
    %45 = arith.addf %42, %44 : vector<8x128xf32>
    %c0_22 = arith.constant 0 : index
    %c0_23 = arith.constant 0 : index
    %46 = vector.load %arg4[%c0_22, %c0_23] : memref<8x128xf32, #tpu.memory_space<vmem>>, vector<8x128xf32>
    tpu.vector_store %arg4[%c0_22, %c0_23], %45 {strides = array<i32>} : memref<8x128xf32, #tpu.memory_space<vmem>>, vector<8x128xf32>,
    return
  }
}

</mosaic_0001>

<llo_original>
// kernel: tpu_custom_call.1
$region0: #{tpu_custom_call.1}
  #allocation0 [shape = 'u32[]', space=smem, size = 0x4, offset = 0x4, fixed_abs, tag = 'smem constant byte address 0x4 - core index']
  #allocation1 [shape = 'u32[144,128]{1,0:T(1,128)}', space=vmem, size = 0x12000, scoped, tag = 'internal scratch']
  %s0 = inlined_call_operand.hbm [shape: u32[4,8,128], index: 0, kind: input, shape index: {}]
  %s1 = inlined_call_operand.hbm [shape: f32[8,128], index: 1, kind: input, shape index: {}]
  %s2 = inlined_call_operand.hbm [shape: f32[128,128], index: 2, kind: input, shape index: {}]
  %s3 = inlined_call_operand.vmem [shape: f32[1,128], index: 3, kind: input, shape index: {}]
  %s4 = inlined_call_operand.hbm [shape: f32[8,128], index: 4, kind: output, shape index: {}]
  %s5 = sld [smem:[#allocation0]]
  $region38: #{tpu_custom_call.1} parent=0
    _
  %s7 = ssub.s32 1, %s5
  %s8 = scalar_select 0, %s7, %s5
  $region1: #{tpu_custom_call.1} parent=0
    #allocation2 [shape = 'u8[16384]{0}', space=vmem, size = 0x4000, scoped, tag = 'input window, operand 0, single buffered']
    #allocation3 [shape = 's32[1]{0}', space=sflag, size = 0x4, scoped, tag = 'scoped memory for tpu_custom_call.1']
    #allocation4 [shape = 's32[1]{0}', space=sflag, size = 0x4, scoped, tag = 'scoped memory for tpu_custom_call.1']
    #allocation5 [shape = 'u8[4096]{0}', space=vmem, size = 0x1000, scoped, tag = 'input window, operand 1, single buffered']
    #allocation6 [shape = 's32[1]{0}', space=sflag, size = 0x4, scoped, tag = 'scoped memory for tpu_custom_call.1']
    #allocation7 [shape = 'u8[65536]{0}', space=vmem, size = 0x10000, scoped, tag = 'input window, operand 2, single buffered']
    #allocation8 [shape = 'u8[4096]{0}', space=vmem, size = 0x1000, scoped, tag = 'output window, operand 0, single buffered']
    %9 = vsyncpa [#allocation3], 0
    %10 = vsyncpa [#allocation6], 0
    %11 = vsyncpa [#allocation4], 0
    // Predicated region
    $region2: #{tpu_custom_call.1} parent=1 // pred_check
      _
    $region3: #{tpu_custom_call.1} parent=1 // pred_check_branch
      %13 = sbr.rel (0) target = $region5
    $region4: #{tpu_custom_call.1} parent=1 // pred_region
      %s15 = ssub.s32 512, 512
      %16 = vsyncadd [#allocation3], %s15
      %s17 = sshll.u32 [#allocation2], 4
      %s18 = int_to_ptr.vmem [resolvable:$true] %s17
      %23 = dma.hbm_to_vmem [thread:$0]  %s0, 512, %s18, [#allocation3], 128, 128, 8
    $region5: #{tpu_custom_call.1} parent=1 // pred_fallthru
      _
    // Predicated region
    $region6: #{tpu_custom_call.1} parent=1 // pred_check
      _
    $region7: #{tpu_custom_call.1} parent=1 // pred_check_branch
      %25 = sbr.rel (0) target = $region9
    $region8: #{tpu_custom_call.1} parent=1 // pred_region
      %s27 = ssub.s32 128, 128
      %28 = vsyncadd [#allocation6], %s27
      %s30 = sshll.u32 [#allocation5], 4
      %s31 = int_to_ptr.vmem [resolvable:$true] %s30
      %33 = dma.hbm_to_vmem [thread:$0]  %s1, 128, %s31, [#allocation6]
    $region9: #{tpu_custom_call.1} parent=1 // pred_fallthru
      _
    // Predicated region
    $region10: #{tpu_custom_call.1} parent=1 // pred_check
      _
    $region11: #{tpu_custom_call.1} parent=1 // pred_check_branch
      %35 = sbr.rel (0) target = $region13
    $region12: #{tpu_custom_call.1} parent=1 // pred_region
      %s37 = ssub.s32 2048, 2048
      %38 = vsyncadd [#allocation6], %s37
      %s39 = sshll.u32 [#allocation7], 4
      %s40 = int_to_ptr.vmem [resolvable:$true] %s39
      %45 = dma.hbm_to_vmem [thread:$0]  %s2, 2048, %s40, [#allocation6], 128, 128, 8
    $region13: #{tpu_custom_call.1} parent=1 // pred_fallthru
      _
    // Predicated region
    $region14: #{tpu_custom_call.1} parent=1 // pred_check
      _
    $region15: #{tpu_custom_call.1} parent=1 // pred_check_branch
      %47 = sbr.rel (0) target = $region17
    $region16: #{tpu_custom_call.1} parent=1 // pred_region
      _
    $region17: #{tpu_custom_call.1} parent=1 // pred_fallthru
      _
    // Predicated region
    $region18: #{tpu_custom_call.1} parent=1 // pred_check
      _
    $region19: #{tpu_custom_call.1} parent=1 // pred_check_branch
      %49 = sbr.rel (0) target = $region21
    $region20: #{tpu_custom_call.1} parent=1 // pred_region
      %50 = dma.done [#allocation3], 512
    $region21: #{tpu_custom_call.1} parent=1 // pred_fallthru
      _
    // Predicated region
    $region22: #{tpu_custom_call.1} parent=1 // pred_check
      _
    $region23: #{tpu_custom_call.1} parent=1 // pred_check_branch
      %52 = sbr.rel (0) target = $region25
    $region24: #{tpu_custom_call.1} parent=1 // pred_region
      %53 = dma.done [#allocation6], 128
    $region25: #{tpu_custom_call.1} parent=1 // pred_fallthru
      _
    // Predicated region
    $region26: #{tpu_custom_call.1} parent=1 // pred_check
      _
    $region27: #{tpu_custom_call.1} parent=1 // pred_check_branch
      %55 = sbr.rel (0) target = $region29
    $region28: #{tpu_custom_call.1} parent=1 // pred_region
      %56 = dma.done [#allocation6], 2048
    $region29: #{tpu_custom_call.1} parent=1 // pred_fallthru
      _
    %v57 = vld [vmem:[#allocation2] sm:$0xff]
    %v58 = vand.u32 %v57, 8388607
    %vm59 = vcmp.ge.u32.totalorder %v58, 2516582
    %v60 = vsel %vm59, 1, 0
    %v61 = vcvt.s32.f32 %v60
    %v62 = vadd.f32 %v61, 0.0
    %s63 = scalar_lea.vmem [#allocation2], 8
    %v64 = vld [vmem:[%s63] sm:$0xff]
    %v65 = vand.u32 %v64, 8388607
    %vm66 = vcmp.ge.u32.totalorder %v65, 2516582
    %v67 = vsel %vm66, 1, 0
    %v68 = vcvt.s32.f32 %v67
    %v69 = vadd.f32 %v62, %v68
    %s70 = scalar_lea.vmem [#allocation2], 16
    %v71 = vld [vmem:[%s70] sm:$0xff]
    %v72 = vand.u32 %v71, 8388607
    %vm73 = vcmp.ge.u32.totalorder %v72, 2516582
    %v74 = vsel %vm73, 1, 0
    %v75 = vcvt.s32.f32 %v74
    %v76 = vadd.f32 %v69, %v75
    %s77 = scalar_lea.vmem [#allocation2], 24
    %v78 = vld [vmem:[%s77] sm:$0xff]
    %v79 = vand.u32 %v78, 8388607
    %vm80 = vcmp.ge.u32.totalorder %v79, 2516582
    %v81 = vsel %vm80, 1, 0
    %v82 = vcvt.s32.f32 %v81
    %v83 = vadd.f32 %v76, %v82
    %v84 = vld [vmem:[#allocation5] sm:$0xff]
    %v85 = vmul.f32 %v84, %v83
    %v86 = vmul.f32 %v85, 0.35714287
    %v87 = vld [vmem:[#allocation7] sm:$0xff]
    %v88 = vld [vmem:[#allocation7 + $0x8] sm:$0xff]
    %v89 = vld [vmem:[#allocation7 + $0x10] sm:$0xff]
    %v90 = vld [vmem:[#allocation7 + $0x18] sm:$0xff]
    %v91 = vld [vmem:[#allocation7 + $0x20] sm:$0xff]
    %v92 = vld [vmem:[#allocation7 + $0x28] sm:$0xff]
    %v93 = vld [vmem:[#allocation7 + $0x30] sm:$0xff]
    %v94 = vld [vmem:[#allocation7 + $0x38] sm:$0xff]
    %v95 = vld [vmem:[#allocation7 + $0x40] sm:$0xff]
    %v96 = vld [vmem:[#allocation7 + $0x48] sm:$0xff]
    %v97 = vld [vmem:[#allocation7 + $0x50] sm:$0xff]
    %v98 = vld [vmem:[#allocation7 + $0x58] sm:$0xff]
    %v99 = vld [vmem:[#allocation7 + $0x60] sm:$0xff]
    %v100 = vld [vmem:[#allocation7 + $0x68] sm:$0xff]
    %v101 = vld [vmem:[#allocation7 + $0x70] sm:$0xff]
    %v102 = vld [vmem:[#allocation7 + $0x78] sm:$0xff]
    %v103 = vld [vmem:[%s3] sm:$0x1]
    %v105 = vlaneseq
    %v106 = vshrl.u32 %v105, 7
    %v107 = vsub.s32 0, %v106
    %v108 = vrot.slane %v103, %v107
    %110 = vmatprep.subr.mxu0 0.0
    %111 = vmatpush1.msra.mxu0 %v87
    %112 = vmatprep.subr.mxu0 0.0
    %113 = vmatpush1.msra.mxu0 %v88
    %114 = vmatprep.subr.mxu0 0.0
    %115 = vmatpush1.msra.mxu0 %v89
    %116 = vmatprep.subr.mxu0 0.0
    %117 = vmatpush1.msra.mxu0 %v90
    %118 = vmatprep.subr.mxu0 0.0
    %119 = vmatpush1.msra.mxu0 %v91
    %120 = vmatprep.subr.mxu0 0.0
    %121 = vmatpush1.msra.mxu0 %v92
    %122 = vmatprep.subr.mxu0 0.0
    %123 = vmatpush1.msra.mxu0 %v93
    %124 = vmatprep.subr.mxu0 0.0
    %125 = vmatpush1.msra.mxu0 %v94
    %126 = vmatprep.subr.mxu0 0.0
    %127 = vmatpush1.msra.mxu0 %v95
    %128 = vmatprep.subr.mxu0 0.0
    %129 = vmatpush1.msra.mxu0 %v96
    %130 = vmatprep.subr.mxu0 0.0
    %131 = vmatpush1.msra.mxu0 %v97
    %132 = vmatprep.subr.mxu0 0.0
    %133 = vmatpush1.msra.mxu0 %v98
    %134 = vmatprep.subr.mxu0 0.0
    %135 = vmatpush1.msra.mxu0 %v99
    %136 = vmatprep.subr.mxu0 0.0
    %137 = vmatpush1.msra.mxu0 %v100
    %138 = vmatprep.subr.mxu0 0.0
    %139 = vmatpush1.msra.mxu0 %v101
    %140 = vmatprep.subr.mxu0 0.0
    %141 = vmatpush1.msra.mxu0 %v102
    %142 = vmatprep.subr.mxu0 0.0
    %143 = vmatpush1.msra.mxu0 0.0
    %144 = vmatprep.subr.mxu0 0.0
    %145 = vmatpush1.msra.mxu0 0.0
    %146 = vmatprep.subr.mxu0 0.0
    %147 = vmatpush1.msra.mxu0 0.0
    %148 = vmatprep.subr.mxu0 0.0
    %149 = vmatpush1.msra.mxu0 0.0
    %150 = vmatprep.subr.mxu0 0.0
    %151 = vmatpush1.msra.mxu0 0.0
    %152 = vmatprep.subr.mxu0 0.0
    %153 = vmatpush1.msra.mxu0 0.0
    %154 = vmatprep.subr.mxu0 0.0
    %155 = vmatpush1.msra.mxu0 0.0
    %156 = vmatprep.subr.mxu0 0.0
    %157 = vmatpush1.msra.mxu0 0.0
    %158 = vmatprep.subr.mxu0 0.0
    %159 = vmatpush1.msra.mxu0 0.0
    %160 = vmatprep.subr.mxu0 0.0
    %161 = vmatpush1.msra.mxu0 0.0
    %162 = vmatprep.subr.mxu0 0.0
    %163 = vmatpush1.msra.mxu0 0.0
    %164 = vmatprep.subr.mxu0 0.0
    %165 = vmatpush1.msra.mxu0 0.0
    %166 = vmatprep.subr.mxu0 0.0
    %167 = vmatpush1.msra.mxu0 0.0
    %168 = vmatprep.subr.mxu0 0.0
    %169 = vmatpush1.msra.mxu0 0.0
    %170 = vmatprep.subr.mxu0 0.0
    %171 = vmatpush1.msra.mxu0 0.0
    %172 = vmatprep.subr.mxu0 0.0
    %173 = vmatpush1.msra.mxu0 0.0
    %174 = vmatprep.mubr.f32.mxu0 0.0
    %175 = vmatmul.mubr.f32.gmra.mrb[0].mxu0 %v86
    %v176 = vpop.f32.mrb[0].mxu0
    %v177 = vadd.f32 %v108, %v176
    %v178 = vpop.f32.mrb[0].mxu0
    %179 = vdwg.mxu0
    %180 = vst [vmem:[#allocation8] sm:$0xff] %v177
    // Predicated region
    $region30: #{tpu_custom_call.1} parent=1 // pred_check
      _
    $region31: #{tpu_custom_call.1} parent=1 // pred_check_branch
      %182 = sbr.rel (0) target = $region33
    $region32: #{tpu_custom_call.1} parent=1 // pred_region
      %s184 = ssub.s32 128, 128
      %185 = vsyncadd [#allocation4], %s184
      %s187 = sshll.u32 [#allocation8], 4
      %s188 = int_to_ptr.vmem [resolvable:$true] %s187
      %190 = dma.vmem_to_hbm [thread:$0]  %s188, 128, %s4, [#allocation4]
    $region33: #{tpu_custom_call.1} parent=1 // pred_fallthru
      _
    // Predicated region
    $region34: #{tpu_custom_call.1} parent=1 // pred_check
      _
    $region35: #{tpu_custom_call.1} parent=1 // pred_check_branch
      %192 = sbr.rel (0) target = $region37
    $region36: #{tpu_custom_call.1} parent=1 // pred_region
      %193 = dma.done [#allocation4], 128
    $region37: #{tpu_custom_call.1} parent=1 // pred_fallthru
      _
    %194 = vsyncpa [#allocation3], 1
    %195 = vsyncpa [#allocation6], 1
    %196 = vsyncpa [#allocation4], 1

</llo_original>
